<compile_context>
chip_gen: v5e
topology: v5e:2x2
jax: 0.10.0
libtpu: 0.0.40
codegen_flags: <defaults>
</compile_context>

<pallas_src>
import jax
import jax.numpy as jnp
from jax.experimental import pallas as pl
from jax.experimental.pallas import tpu as pltpu


def _block_kernel(x_ref, scale_ref, shift_ref, w_ref, b_ref, o_ref):
    # x_ref: (C, Nt) slab — one batch element, one lane-dense N tile.
    h = x_ref[...] * scale_ref[...] + shift_ref[...]      # eval-mode BN (folded FMA)
    h = jnp.maximum(h, 0.0)                               # ReLU (VPU)
    # pointwise conv == channel projection on the MXU: (Co, C) @ (C, Nt) -> (Co, Nt)
    y = jnp.dot(w_ref[...], h,
                preferred_element_type=jnp.float32,
                precision=jax.lax.Precision.HIGHEST)
    o_ref[...] = (y + b_ref[...]).astype(o_ref.dtype)


def _pick_n_tile(n):
    # Prefer a large multiple of 128 (lane-dense, unmasked stores); otherwise
    # fall back to the full (possibly ragged) extent, which is always legal.
    for t in (1024, 512, 256, 128):
        if n % t == 0:
            return t
    return n


def block_forward(x, gamma, beta, running_mean, running_var, w, b, *, eps=1e-5):
    """x: (B, C, N) f32; gamma/beta/mean/var: (C,); w: (Co, C); b: (Co,)."""
    B, C, N = x.shape
    Co = w.shape[0]
    nt = _pick_n_tile(N)

    # Fold eval-mode BatchNorm into a single per-channel affine (done once).
    inv_std = 1.0 / jnp.sqrt(running_var.astype(jnp.float32) + eps)
    scale = (gamma * inv_std).reshape(C, 1).astype(jnp.float32)
    shift = (beta - running_mean * gamma * inv_std).reshape(C, 1).astype(jnp.float32)
    bias = b.reshape(Co, 1).astype(jnp.float32)

    grid = (B, N // nt)

    flops = 2 * B * Co * C * N + 3 * B * C * N
    bytes_accessed = 4 * (B * C * N + B * Co * N + Co * C + 2 * C + Co)

    return pl.pallas_call(
        _block_kernel,
        out_shape=jax.ShapeDtypeStruct((B, Co, N), x.dtype),
        grid=grid,
        in_specs=[
            # x: one batch element (squeezed), one lane-dense N tile.
            pl.BlockSpec((None, C, nt), lambda bi, ni: (bi, 0, ni)),
            # per-channel BN scale / shift, full conv weight & bias: constant
            # index maps -> stay resident in VMEM across grid steps.
            pl.BlockSpec((C, 1), lambda bi, ni: (0, 0)),
            pl.BlockSpec((C, 1), lambda bi, ni: (0, 0)),
            pl.BlockSpec((Co, C), lambda bi, ni: (0, 0)),
            pl.BlockSpec((Co, 1), lambda bi, ni: (0, 0)),
        ],
        out_specs=pl.BlockSpec((None, Co, nt), lambda bi, ni: (bi, 0, ni)),
        compiler_params=pltpu.CompilerParams(
            dimension_semantics=("parallel", "parallel"),
            vmem_limit_bytes=64 * 1024 * 1024,
        ),
        cost_estimate=pl.CostEstimate(
            flops=flops, transcendentals=0, bytes_accessed=bytes_accessed),
    )(x, scale, shift, w, bias)


def block_ref(x, gamma, beta, running_mean, running_var, w, b, eps=1e-5):
    inv_std = 1.0 / jnp.sqrt(running_var + eps)
    xn = (x - running_mean[None, :, None]) * inv_std[None, :, None]
    xn = gamma[None, :, None] * xn + beta[None, :, None]
    h = jnp.maximum(xn, 0.0)
    out = jnp.einsum('oc,bcn->bon', w, h,
                     precision=jax.lax.Precision.HIGHEST)
    return out + b[None, :, None]


if __name__ == "__main__":
    key = jax.random.PRNGKey(0)
    kx, kg, kb, km, kv, kw, kbi = jax.random.split(key, 7)

    B, C, N = 2, 4, 16        # (batch, dim, seq) — Conv1d's "b c n" layout
    Co = C                    # dim_out defaults to dim

    x = jax.random.normal(kx, (B, C, N), dtype=jnp.float32)
    gamma = 1.0 + 0.1 * jax.random.normal(kg, (C,), dtype=jnp.float32)
    beta = 0.1 * jax.random.normal(kb, (C,), dtype=jnp.float32)
    running_mean = 0.1 * jax.random.normal(km, (C,), dtype=jnp.float32)
    running_var = jax.random.uniform(kv, (C,), jnp.float32, 0.5, 1.5)
    lim = 1.0 / (C ** 0.5)    # nn.Conv1d default init bound (kernel_size=1)
    w = jax.random.uniform(kw, (Co, C), jnp.float32, -lim, lim)
    b = jax.random.uniform(kbi, (Co,), jnp.float32, -lim, lim)

    out = block_forward(x, gamma, beta, running_mean, running_var, w, b)
    out = jax.block_until_ready(out)

    ref = block_ref(x, gamma, beta, running_mean, running_var, w, b)
    assert out.shape == (B, Co, N)
    assert jnp.allclose(out, ref, atol=1e-5, rtol=1e-5), "mismatch vs reference"

    print("KERNEL_OK")
</pallas_src>

<mosaic_0001>
module attributes {stable_mosaic.version = 11 : i64} {
  func.func @_block_kernel(%arg0: i32, %arg1: i32, %arg2: memref<1x4x16xf32, #tpu.memory_space<vmem>>, %arg3: memref<4x1xf32, #tpu.memory_space<vmem>>, %arg4: memref<4x1xf32, #tpu.memory_space<vmem>>, %arg5: memref<4x4xf32, #tpu.memory_space<vmem>>, %arg6: memref<4x1xf32, #tpu.memory_space<vmem>>, %arg7: memref<1x4x16xf32, #tpu.memory_space<vmem>>) attributes {dimension_semantics = [#tpu.dimension_semantics<parallel>, #tpu.dimension_semantics<parallel>], iteration_bounds = array<i64: 2, 1>, scalar_prefetch = 0 : i64, scratch_operands = 0 : i64, tpu.core_type = #tpu.core_type<tc>, window_params = [{transform_indices = @transform_0, window_bounds = array<i64: 1, 4, 16>}, {pipeline_mode = #tpu.pipeline_mode<synchronous>, transform_indices = @transform_1, window_bounds = array<i64: 4, 1>}, {pipeline_mode = #tpu.pipeline_mode<synchronous>, transform_indices = @transform_2, window_bounds = array<i64: 4, 1>}, {pipeline_mode = #tpu.pipeline_mode<synchronous>, transform_indices = @transform_3, window_bounds = array<i64: 4, 4>}, {pipeline_mode = #tpu.pipeline_mode<synchronous>, transform_indices = @transform_4, window_bounds = array<i64: 4, 1>}, {transform_indices = @transform_5, window_bounds = array<i64: 1, 4, 16>}]} {
    %c0 = arith.constant 0 : index
    %c0_0 = arith.constant 0 : index
    %c0_1 = arith.constant 0 : index
    %0 = vector.load %arg2[%c0, %c0_0, %c0_1] : memref<1x4x16xf32, #tpu.memory_space<vmem>>, vector<1x4x16xf32>
    %1 = vector.shape_cast %0 : vector<1x4x16xf32> to vector<4x16xf32>
    %c0_2 = arith.constant 0 : index
    %c0_3 = arith.constant 0 : index
    %2 = vector.load %arg3[%c0_2, %c0_3] : memref<4x1xf32, #tpu.memory_space<vmem>>, vector<4x1xf32>
    %3 = vector.broadcast %2 : vector<4x1xf32> to vector<4x16xf32>
    %4 = arith.mulf %1, %3 : vector<4x16xf32>
    %c0_4 = arith.constant 0 : index
    %c0_5 = arith.constant 0 : index
    %5 = vector.load %arg4[%c0_4, %c0_5] : memref<4x1xf32, #tpu.memory_space<vmem>>, vector<4x1xf32>
    %6 = vector.broadcast %5 : vector<4x1xf32> to vector<4x16xf32>
    %7 = arith.addf %4, %6 : vector<4x16xf32>
    %cst = arith.constant 0.000000e+00 : f32
    %8 = vector.broadcast %cst : f32 to vector<4x16xf32>
    %9 = arith.maximumf %7, %8 : vector<4x16xf32>
    %c0_6 = arith.constant 0 : index
    %c0_7 = arith.constant 0 : index
    %10 = vector.load %arg5[%c0_6, %c0_7] : memref<4x4xf32, #tpu.memory_space<vmem>>, vector<4x4xf32>
    %cst_8 = arith.constant dense<0.000000e+00> : vector<4x16xf32>
    %11 = tpu.matmul %10, %9, %cst_8 {dimension_numbers = #tpu.dot_dimension_numbers<[1], [0], [0], [1], [0, 0, 1, 1], [], []>, precision = #tpu.contract_precision<fp32>} : vector<4x4xf32>, vector<4x16xf32>, vector<4x16xf32> -> vector<4x16xf32>
    %c0_9 = arith.constant 0 : index
    %c0_10 = arith.constant 0 : index
    %12 = vector.load %arg6[%c0_9, %c0_10] : memref<4x1xf32, #tpu.memory_space<vmem>>, vector<4x1xf32>
    %13 = vector.broadcast %12 : vector<4x1xf32> to vector<4x16xf32>
    %14 = arith.addf %11, %13 : vector<4x16xf32>
    %c0_11 = arith.constant 0 : index
    %c0_12 = arith.constant 0 : index
    %c0_13 = arith.constant 0 : index
    %15 = vector.load %arg7[%c0_11, %c0_12, %c0_13] : memref<1x4x16xf32, #tpu.memory_space<vmem>>, vector<1x4x16xf32>
    %16 = vector.shape_cast %15 : vector<1x4x16xf32> to vector<4x16xf32>
    %17 = vector.shape_cast %14 : vector<4x16xf32> to vector<1x4x16xf32>
    tpu.vector_store %arg7[%c0_11, %c0_12, %c0_13], %17 {strides = array<i32>} : memref<1x4x16xf32, #tpu.memory_space<vmem>>, vector<1x4x16xf32>,
    return
  }
  func.func @transform_0(%arg0: i32, %arg1: i32) -> (i32, i32, i32) {
    %c0_i32 = arith.constant 0 : i32
    %c0_i32_0 = arith.constant 0 : i32
    return %arg0, %c0_i32, %arg1 : i32, i32, i32
  }
  func.func @transform_1(%arg0: i32, %arg1: i32) -> (i32, i32) {
    %c0_i32 = arith.constant 0 : i32
    %c0_i32_0 = arith.constant 0 : i32
    %c0_i32_1 = arith.constant 0 : i32
    return %c0_i32, %c0_i32_0 : i32, i32
  }
  func.func @transform_2(%arg0: i32, %arg1: i32) -> (i32, i32) {
    %c0_i32 = arith.constant 0 : i32
    %c0_i32_0 = arith.constant 0 : i32
    %c0_i32_1 = arith.constant 0 : i32
    return %c0_i32, %c0_i32_0 : i32, i32
  }
  func.func @transform_3(%arg0: i32, %arg1: i32) -> (i32, i32) {
    %c0_i32 = arith.constant 0 : i32
    %c0_i32_0 = arith.constant 0 : i32
    %c0_i32_1 = arith.constant 0 : i32
    return %c0_i32, %c0_i32_0 : i32, i32
  }
  func.func @transform_4(%arg0: i32, %arg1: i32) -> (i32, i32) {
    %c0_i32 = arith.constant 0 : i32
    %c0_i32_0 = arith.constant 0 : i32
    %c0_i32_1 = arith.constant 0 : i32
    return %c0_i32, %c0_i32_0 : i32, i32
  }
  func.func @transform_5(%arg0: i32, %arg1: i32) -> (i32, i32, i32) {
    %c0_i32 = arith.constant 0 : i32
    %c0_i32_0 = arith.constant 0 : i32
    return %arg0, %c0_i32, %arg1 : i32, i32, i32
  }
}

</mosaic_0001>

<llo_original>
// kernel: tpu_custom_call.1
$region0: #{tpu_custom_call.1}
  #allocation0 [shape = 'u32[]', space=smem, size = 0x4, offset = 0x4, fixed_abs, tag = 'smem constant byte address 0x4 - core index']
  #allocation1 [shape = 'u32[72,128]{1,0:T(1,128)}', space=vmem, size = 0x9000, scoped, tag = 'internal scratch']
  %s0 = inlined_call_operand.vmem [shape: f32[2,4,16], index: 0, kind: input, shape index: {}]
  %s1 = inlined_call_operand.vmem [shape: f32[4,1], index: 1, kind: input, shape index: {}]
  %s2 = inlined_call_operand.vmem [shape: f32[4,1], index: 2, kind: input, shape index: {}]
  %s3 = inlined_call_operand.vmem [shape: f32[4,4], index: 3, kind: input, shape index: {}]
  %s4 = inlined_call_operand.vmem [shape: f32[4,1], index: 4, kind: input, shape index: {}]
  %s5 = inlined_call_operand.hbm [shape: f32[2,4,16], index: 5, kind: output, shape index: {}]
  %s6 = sld [smem:[#allocation0]]
  $region53: #{tpu_custom_call.1} parent=0
    _
  %s8 = ssub.s32 1, %s6
  %s9 = scalar_select 0, %s8, %s6
  $region1: #{tpu_custom_call.1} parent=0
    #allocation2 [shape = 'u8[4096]{0}', space=vmem, size = 0x1000, scoped, tag = 'output window, operand 0']
    #allocation3 [shape = 's32[2]{0}', space=sflag, size = 0x8, scoped, tag = 'scoped memory for tpu_custom_call.1']
    %10 = vsyncpa [#allocation3], 0
    %s11 = scalar_lea.sflag [#allocation3], 1
    %12 = vsyncpa %s11, 0
    loop: start=0, step=1, limit=4
    $region2: #{tpu_custom_call.1} parent=1 // loop_pre_header
      _
    $region3: #{tpu_custom_call.1} parent=1 // loop_header
      %s14 = sphi 0, %s18
      %p15 = scmp.ge.s32.totalorder %s14, 4
      %s21 = sphi 0, %s33
      %s22 = sphi 0, %s29
      %s23 = sphi 0, %s21
      %s24 = sphi 0, %s22
      %s25 = sphi 0, %s23
      %s26 = sphi 0, %s24
      %s38 = sphi 0, %s40
      %s41 = sphi 0, %s38
      %s42 = sphi 0, %s41
      %s58 = sphi 0, %s42
      %s62 = sphi 0, %s62
      %s64 = sphi 0, %s62
      %s65 = sphi 0, %s64
      %s79 = sphi 0, %s65
      %s83 = sphi 0, %s83
      %s85 = sphi 0, %s83
      %s86 = sphi 0, %s85
      %s100 = sphi 0, %s86
      %s104 = sphi 0, %s104
      %s106 = sphi 0, %s104
      %s107 = sphi 0, %s106
      %s121 = sphi 0, %s107
      %s125 = sphi 0, %s125
      %s127 = sphi 0, %s125
      %s128 = sphi 0, %s127
      %s142 = sphi 0, %s128
      %s150 = sphi 0, %s152
      %s153 = sphi 0, %s150
      %s154 = sphi 0, %s153
      %s170 = sphi 0, %s154
    $region4: #{tpu_custom_call.1} parent=1 // loop_header_branch
      %17 = sbr.rel (%p15) target = $region8
    $region5: #{tpu_custom_call.1} parent=1 // loop_body
      %s19 = ssub.s32 %s14, 1
      %s20 = ssub.s32 %s14, 2
      %s27 = sadd.s32 1, %s22
      %p28 = scmp.ge.s32.totalorder %s27, 1
      %s29 = scalar_select %p28, 0, %s27
      %s30 = sadd.s32 1, %s21
      %s31 = scalar_select %p28, %s30, %s21
      %p32 = scmp.ge.s32.totalorder %s31, 2
      %s33 = scalar_select %p32, 0, %s31
      %s34 = ssub.s32 %s21, %s33
      %s35 = ssub.s32 %s22, %s29
      %s36 = sor.u32 %s34, %s35
      %p37 = scmp.eq.s32.totalorder %s36, 0
      %s39 = sadd.s32 %s38, 1
      %s40 = scalar_select %p37, %s38, %s39
      %p43 = pneg %p37
      %p44 = scmp.eq.s32.totalorder %s14, 1
      %p45 = por %p43, %p44
      %p46 = scmp.ne.s32.totalorder %s38, %s41
      %p47 = scmp.eq.s32.totalorder %s14, 0
      %p48 = por %p46, %p47
      %p49 = scmp.ne.s32.totalorder %s38, %s41
      %p50 = scmp.eq.s32.totalorder %s19, 1
      %p51 = por %p49, %p50
      %p52 = scmp.ne.s32.totalorder %s41, %s42
      %p53 = scmp.eq.s32.totalorder %s19, 0
      %p54 = por %p52, %p53
      %p55 = scmp.ne.s32.totalorder %s41, %s42
      %p56 = scmp.eq.s32.totalorder %s20, 1
      %p57 = por %p55, %p56
      %p59 = scmp.ne.s32.totalorder %s42, %s58
      %p60 = scmp.eq.s32.totalorder %s20, 0
      %p61 = por %p59, %p60
      %s63 = sadd.s32 %s62, 1
      %p66 = scmp.eq.s32.totalorder %s14, 1
      %p67 = scmp.ne.s32.totalorder %s62, %s64
      %p68 = scmp.eq.s32.totalorder %s14, 0
      %p69 = por %p67, %p68
      %p70 = scmp.ne.s32.totalorder %s62, %s64
      %p71 = scmp.eq.s32.totalorder %s19, 1
      %p72 = por %p70, %p71
      %p73 = scmp.ne.s32.totalorder %s64, %s65
      %p74 = scmp.eq.s32.totalorder %s19, 0
      %p75 = por %p73, %p74
      %p76 = scmp.ne.s32.totalorder %s64, %s65
      %p77 = scmp.eq.s32.totalorder %s20, 1
      %p78 = por %p76, %p77
      %p80 = scmp.ne.s32.totalorder %s65, %s79
      %p81 = scmp.eq.s32.totalorder %s20, 0
      %p82 = por %p80, %p81
      %s84 = sadd.s32 %s83, 1
      %p87 = scmp.eq.s32.totalorder %s14, 1
      %p88 = scmp.ne.s32.totalorder %s83, %s85
      %p89 = scmp.eq.s32.totalorder %s14, 0
      %p90 = por %p88, %p89
      %p91 = scmp.ne.s32.totalorder %s83, %s85
      %p92 = scmp.eq.s32.totalorder %s19, 1
      %p93 = por %p91, %p92
      %p94 = scmp.ne.s32.totalorder %s85, %s86
      %p95 = scmp.eq.s32.totalorder %s19, 0
      %p96 = por %p94, %p95
      %p97 = scmp.ne.s32.totalorder %s85, %s86
      %p98 = scmp.eq.s32.totalorder %s20, 1
      %p99 = por %p97, %p98
      %p101 = scmp.ne.s32.totalorder %s86, %s100
      %p102 = scmp.eq.s32.totalorder %s20, 0
      %p103 = por %p101, %p102
      %s105 = sadd.s32 %s104, 1
      %p108 = scmp.eq.s32.totalorder %s14, 1
      %p109 = scmp.ne.s32.totalorder %s104, %s106
      %p110 = scmp.eq.s32.totalorder %s14, 0
      %p111 = por %p109, %p110
      %p112 = scmp.ne.s32.totalorder %s104, %s106
      %p113 = scmp.eq.s32.totalorder %s19, 1
      %p114 = por %p112, %p113
      %p115 = scmp.ne.s32.totalorder %s106, %s107
      %p116 = scmp.eq.s32.totalorder %s19, 0
      %p117 = por %p115, %p116
      %p118 = scmp.ne.s32.totalorder %s106, %s107
      %p119 = scmp.eq.s32.totalorder %s20, 1
      %p120 = por %p118, %p119
      %p122 = scmp.ne.s32.totalorder %s107, %s121
      %p123 = scmp.eq.s32.totalorder %s20, 0
      %p124 = por %p122, %p123
      %s126 = sadd.s32 %s125, 1
      %p129 = scmp.eq.s32.totalorder %s14, 1
      %p130 = scmp.ne.s32.totalorder %s125, %s127
      %p131 = scmp.eq.s32.totalorder %s14, 0
      %p132 = por %p130, %p131
      %p133 = scmp.ne.s32.totalorder %s125, %s127
      %p134 = scmp.eq.s32.totalorder %s19, 1
      %p135 = por %p133, %p134
      %p136 = scmp.ne.s32.totalorder %s127, %s128
      %p137 = scmp.eq.s32.totalorder %s19, 0
      %p138 = por %p136, %p137
      %p139 = scmp.ne.s32.totalorder %s127, %s128
      %p140 = scmp.eq.s32.totalorder %s20, 1
      %p141 = por %p139, %p140
      %p143 = scmp.ne.s32.totalorder %s128, %s142
      %p144 = scmp.eq.s32.totalorder %s20, 0
      %p145 = por %p143, %p144
      %s146 = ssub.s32 %s21, %s33
      %s147 = ssub.s32 %s22, %s29
      %s148 = sor.u32 %s146, %s147
      %p149 = scmp.eq.s32.totalorder %s148, 0
      %s151 = sadd.s32 %s150, 1
      %s152 = scalar_select %p149, %s150, %s151
      %p155 = pneg %p149
      %p156 = scmp.eq.s32.totalorder %s14, 1
      %p157 = por %p155, %p156
      %p158 = scmp.ne.s32.totalorder %s150, %s153
      %p159 = scmp.eq.s32.totalorder %s14, 0
      %p160 = por %p158, %p159
      %p161 = scmp.ne.s32.totalorder %s150, %s153
      %p162 = scmp.eq.s32.totalorder %s19, 1
      %p163 = por %p161, %p162
      %p164 = scmp.ne.s32.totalorder %s153, %s154
      %p165 = scmp.eq.s32.totalorder %s19, 0
      %p166 = por %p164, %p165
      %p167 = scmp.ne.s32.totalorder %s153, %s154
      %p168 = scmp.eq.s32.totalorder %s20, 1
      %p169 = por %p167, %p168
      %p171 = scmp.ne.s32.totalorder %s154, %s170
      %p172 = scmp.eq.s32.totalorder %s20, 0
      %p173 = por %p171, %p172
      %p174 = scmp.le.s32.totalorder 1, %s14
      %p175 = scmp.lt.s32.totalorder %s14, 3
      %p176 = pnand %p174, %p175
      %p177 = pneg %p176
      // Predicated region
      $region9: #{tpu_custom_call.1} parent=5 // pred_check
        _
      $region10: #{tpu_custom_call.1} parent=5 // pred_check_branch
        %179 = sbr.rel (%p176) target = $region12
      $region11: #{tpu_custom_call.1} parent=5 // pred_region
        %s180 = ssub.s32 %s14, 1
        // Predicated region
        $region13: #{tpu_custom_call.1} parent=11 // pred_check
          %p181 = pneg %p75
        $region14: #{tpu_custom_call.1} parent=11 // pred_check_branch
          %183 = sbr.rel (%p181) target = $region16
        $region15: #{tpu_custom_call.1} parent=11 // pred_region
          _
        $region16: #{tpu_custom_call.1} parent=11 // pred_fallthru
          _
        // Predicated region
        $region17: #{tpu_custom_call.1} parent=11 // pred_check
          %p184 = pneg %p96
        $region18: #{tpu_custom_call.1} parent=11 // pred_check_branch
          %186 = sbr.rel (%p184) target = $region20
        $region19: #{tpu_custom_call.1} parent=11 // pred_region
          _
        $region20: #{tpu_custom_call.1} parent=11 // pred_fallthru
          _
        // Predicated region
        $region21: #{tpu_custom_call.1} parent=11 // pred_check
          %p187 = pneg %p117
        $region22: #{tpu_custom_call.1} parent=11 // pred_check_branch
          %189 = sbr.rel (%p187) target = $region24
        $region23: #{tpu_custom_call.1} parent=11 // pred_region
          _
        $region24: #{tpu_custom_call.1} parent=11 // pred_fallthru
          _
        // Predicated region
        $region25: #{tpu_custom_call.1} parent=11 // pred_check
          %p190 = pneg %p138
        $region26: #{tpu_custom_call.1} parent=11 // pred_check_branch
          %192 = sbr.rel (%p190) target = $region28
        $region27: #{tpu_custom_call.1} parent=11 // pred_region
          _
        $region28: #{tpu_custom_call.1} parent=11 // pred_fallthru
          _
      $region12: #{tpu_custom_call.1} parent=5 // pred_fallthru
        _
      %p193 = scmp.lt.s32.totalorder %s14, 2
      // Predicated region
      $region29: #{tpu_custom_call.1} parent=5 // pred_check
        %p194 = pneg %p193
      $region30: #{tpu_custom_call.1} parent=5 // pred_check_branch
        %196 = sbr.rel (%p194) target = $region32
      $region31: #{tpu_custom_call.1} parent=5 // pred_region
        // Predicated region
        $region33: #{tpu_custom_call.1} parent=31 // pred_check
          %p197 = pneg %p48
        $region34: #{tpu_custom_call.1} parent=31 // pred_check_branch
          %199 = sbr.rel (%p197) target = $region36
        $region35: #{tpu_custom_call.1} parent=31 // pred_region
          %p200 = scmp.lt.s32.totalorder %s21, 1
          %s201 = scalar_select %p200, %s21, 1
          %p202 = scmp.lt.s32.totalorder %s22, 0
          %s203 = scalar_select %p202, %s22, 0
          %s204 = sadd.s32 %s203, %s201
          %s205 = smul.addr %s204, 4
          %s206 = scalar_lea.vmem %s0, %s205
        $region36: #{tpu_custom_call.1} parent=31 // pred_fallthru
          _
      $region32: #{tpu_custom_call.1} parent=5 // pred_fallthru
        _
      %p207 = scmp.le.s32.totalorder 1, %s14
      %p208 = scmp.lt.s32.totalorder %s14, 3
      %p209 = pnand %p207, %p208
      %p210 = pneg %p209
      // Predicated region
      $region37: #{tpu_custom_call.1} parent=5 // pred_check
        _
      $region38: #{tpu_custom_call.1} parent=5 // pred_check_branch
        %212 = sbr.rel (%p209) target = $region40
      $region39: #{tpu_custom_call.1} parent=5 // pred_region
        %s213 = ssub.s32 %s14, 1
        %p214 = scmp.lt.s32.totalorder %s23, 1
        %s215 = scalar_select %p214, %s23, 1
        %p216 = scmp.lt.s32.totalorder %s24, 0
        %s217 = scalar_select %p216, %s24, 0
        %s218 = sadd.s32 %s217, %s215
        %s219 = smul.addr %s218, 4
        %s220 = scalar_lea.vmem %s0, %s219
        %p221 = pneg %p54
        %p222 = pneg %p51
        %p223 = pneg %p75
        %p224 = pneg %p72
        %p225 = pneg %p96
        %p226 = pneg %p93
        %p227 = pneg %p117
        %p228 = pneg %p114
        %p229 = pneg %p138
        %p230 = pneg %p135
        %p231 = pneg %p166
        %p232 = pneg %p163
        %s233 = sand.u32 %s153, 1
        %s234 = scalar_lea.sflag [#allocation3], %s233
        %s235 = sand.u32 %s153, 1
        %s236 = smul.addr %s235, 4
        %s237 = scalar_lea.vmem [#allocation2], %s236
        %p238 = scmp.lt.s32.totalorder %s23, 1
        %s239 = scalar_select %p238, %s23, 1
        %p240 = scmp.lt.s32.totalorder %s24, 0
        %s241 = scalar_select %p240, %s24, 0
        %s242 = sadd.s32 %s241, %s239
        %s243 = smul.addr %s242, 4
        %s244 = scalar_lea.vmem %s0, %s243
        %v245 = vld [vmem:[%s244] sm:$0xf]
        %v246 = vld [vmem:[%s1] sm:$0xf]
        %248 = vset.pattern.permute.xlu0 0
        %249 = vperm.xlu0 %248, %v246
        %v250 = vpop.permute.xlu0 %249
        %v252 = vmul.f32 %v245, %v250
        %v253 = vld [vmem:[%s2] sm:$0xf]
        %255 = vset.pattern.permute.xlu0 0
        %256 = vperm.xlu0 %255, %v253
        %v257 = vpop.permute.xlu0 %256
        %v259 = vadd.f32 %v252, %v257
        %v260 = vmax.f32 %v259, 0.0
        %v261 = vld [vmem:[%s3] sm:$0xf]
        %v262 = vld [vmem:[%s4] sm:$0xf]
        %264 = vset.pattern.permute.xlu0 0
        %265 = vperm.xlu0 %264, %v262
        %v266 = vpop.permute.xlu0 %265
        %vm268 = vcmask 31744
        %v270 = vsel %vm268, %v261, 0
        %vm272 = vcmask 1043456
        %v274 = vsel %vm272, %v260, 0
        %276 = vmatpush.msra.mxu0 0.0
        %277 = vmatpush.msra.mxu0 0.0
        %278 = vmatpush.msra.mxu0 0.0
        %279 = vmatpush.msra.mxu0 0.0
        %280 = vmatpush.msra.mxu0 0.0
        %281 = vmatpush.msra.mxu0 0.0
        %282 = vmatpush.msra.mxu0 0.0
        %283 = vmatpush.msra.mxu0 0.0
        %284 = vmatpush.msra.mxu0 0.0
        %285 = vmatpush.msra.mxu0 0.0
        %286 = vmatpush.msra.mxu0 0.0
        %287 = vmatpush.msra.mxu0 0.0
        %288 = vmatpush.msra.mxu0 0.0
        %289 = vmatpush.msra.mxu0 0.0
        %290 = vmatpush.msra.mxu0 0.0
        %v291 = vand.u32 %v274, 4294901760
        %292 = vmatpush.msra.mxu0 %v291
        %v293 = vand.u32 %v270, 4294901760
        %v294 = vsub.f32 %v270, %v293
        %v295 = vand.u32 %v294, 4294901760
        %v296 = vsub.f32 %v294, %v295
        %v297 = vand.u32 %v296, 4294901760
        %298 = vmatmul.f32.gmra.mxu0 %v297
        %v299 = vpop.f32.mrf.mxu0
        %v300 = vadd.f32 %v266, %v299
        %301 = vdwg.mxu0
        %302 = vmatpush.msra.mxu0 0.0
        %303 = vmatpush.msra.mxu0 0.0
        %304 = vmatpush.msra.mxu0 0.0
        %305 = vmatpush.msra.mxu0 0.0
        %306 = vmatpush.msra.mxu0 0.0
        %307 = vmatpush.msra.mxu0 0.0
        %308 = vmatpush.msra.mxu0 0.0
        %309 = vmatpush.msra.mxu0 0.0
        %310 = vmatpush.msra.mxu0 0.0
        %311 = vmatpush.msra.mxu0 0.0
        %312 = vmatpush.msra.mxu0 0.0
        %313 = vmatpush.msra.mxu0 0.0
        %314 = vmatpush.msra.mxu0 0.0
        %315 = vmatpush.msra.mxu0 0.0
        %316 = vmatpush.msra.mxu0 0.0
        %v317 = vand.u32 %v274, 4294901760
        %v318 = vsub.f32 %v274, %v317
        %v319 = vand.u32 %v318, 4294901760
        %v320 = vsub.f32 %v318, %v319
        %v321 = vand.u32 %v320, 4294901760
        %322 = vmatpush.msra.mxu0 %v321
        %v323 = vand.u32 %v270, 4294901760
        %324 = vmatmul.f32.gmra.mxu0 %v323
        %v325 = vpop.f32.mrf.mxu0
        %v326 = vadd.f32 %v300, %v325
        %327 = vdwg.mxu0
        %328 = vmatpush.msra.mxu0 0.0
        %329 = vmatpush.msra.mxu0 0.0
        %330 = vmatpush.msra.mxu0 0.0
        %331 = vmatpush.msra.mxu0 0.0
        %332 = vmatpush.msra.mxu0 0.0
        %333 = vmatpush.msra.mxu0 0.0
        %334 = vmatpush.msra.mxu0 0.0
        %335 = vmatpush.msra.mxu0 0.0
        %336 = vmatpush.msra.mxu0 0.0
        %337 = vmatpush.msra.mxu0 0.0
        %338 = vmatpush.msra.mxu0 0.0
        %339 = vmatpush.msra.mxu0 0.0
        %340 = vmatpush.msra.mxu0 0.0
        %341 = vmatpush.msra.mxu0 0.0
        %342 = vmatpush.msra.mxu0 0.0
        %v343 = vand.u32 %v274, 4294901760
        %v344 = vsub.f32 %v274, %v343
        %345 = vmatpush.msra.mxu0 %v344
        %v346 = vand.u32 %v270, 4294901760
        %v347 = vsub.f32 %v270, %v346
        %348 = vmatmul.f32.gmra.mxu0 %v347
        %v349 = vpop.f32.mrf.mxu0
        %v350 = vadd.f32 %v326, %v349
        %351 = vdwg.mxu0
        %352 = vmatpush.msra.mxu0 0.0
        %353 = vmatpush.msra.mxu0 0.0
        %354 = vmatpush.msra.mxu0 0.0
        %355 = vmatpush.msra.mxu0 0.0
        %356 = vmatpush.msra.mxu0 0.0
        %357 = vmatpush.msra.mxu0 0.0
        %358 = vmatpush.msra.mxu0 0.0
        %359 = vmatpush.msra.mxu0 0.0
        %360 = vmatpush.msra.mxu0 0.0
        %361 = vmatpush.msra.mxu0 0.0
        %362 = vmatpush.msra.mxu0 0.0
        %363 = vmatpush.msra.mxu0 0.0
        %364 = vmatpush.msra.mxu0 0.0
        %365 = vmatpush.msra.mxu0 0.0
        %366 = vmatpush.msra.mxu0 0.0
        %v367 = vand.u32 %v274, 4294901760
        %368 = vmatpush.msra.mxu0 %v367
        %v369 = vand.u32 %v270, 4294901760
        %v370 = vsub.f32 %v270, %v369
        %v371 = vand.u32 %v370, 4294901760
        %372 = vmatmul.f32.gmra.mxu0 %v371
        %v373 = vpop.f32.mrf.mxu0
        %v374 = vadd.f32 %v350, %v373
        %375 = vdwg.mxu0
        %376 = vmatpush.msra.mxu0 0.0
        %377 = vmatpush.msra.mxu0 0.0
        %378 = vmatpush.msra.mxu0 0.0
        %379 = vmatpush.msra.mxu0 0.0
        %380 = vmatpush.msra.mxu0 0.0
        %381 = vmatpush.msra.mxu0 0.0
        %382 = vmatpush.msra.mxu0 0.0
        %383 = vmatpush.msra.mxu0 0.0
        %384 = vmatpush.msra.mxu0 0.0
        %385 = vmatpush.msra.mxu0 0.0
        %386 = vmatpush.msra.mxu0 0.0
        %387 = vmatpush.msra.mxu0 0.0
        %388 = vmatpush.msra.mxu0 0.0
        %389 = vmatpush.msra.mxu0 0.0
        %390 = vmatpush.msra.mxu0 0.0
        %v391 = vand.u32 %v274, 4294901760
        %v392 = vsub.f32 %v274, %v391
        %v393 = vand.u32 %v392, 4294901760
        %394 = vmatpush.msra.mxu0 %v393
        %v395 = vand.u32 %v270, 4294901760
        %396 = vmatmul.f32.gmra.mxu0 %v395
        %v397 = vpop.f32.mrf.mxu0
        %v398 = vadd.f32 %v374, %v397
        %399 = vdwg.mxu0
        %400 = vmatpush.msra.mxu0 0.0
        %401 = vmatpush.msra.mxu0 0.0
        %402 = vmatpush.msra.mxu0 0.0
        %403 = vmatpush.msra.mxu0 0.0
        %404 = vmatpush.msra.mxu0 0.0
        %405 = vmatpush.msra.mxu0 0.0
        %406 = vmatpush.msra.mxu0 0.0
        %407 = vmatpush.msra.mxu0 0.0
        %408 = vmatpush.msra.mxu0 0.0
        %409 = vmatpush.msra.mxu0 0.0
        %410 = vmatpush.msra.mxu0 0.0
        %411 = vmatpush.msra.mxu0 0.0
        %412 = vmatpush.msra.mxu0 0.0
        %413 = vmatpush.msra.mxu0 0.0
        %414 = vmatpush.msra.mxu0 0.0
        %v415 = vand.u32 %v274, 4294901760
        %416 = vmatpush.msra.mxu0 %v415
        %v417 = vand.u32 %v270, 4294901760
        %418 = vmatmul.f32.gmra.mxu0 %v417
        %v419 = vpop.f32.mrf.mxu0
        %v420 = vadd.f32 %v398, %v419
        %421 = vdwg.mxu0
        %vm422 = vcmask 125952
        %423 = vst.msk [vmem:[%s237] sm:$0xf] %vm422, %v420
        %s424 = sand.u32 %s153, 1
        %s425 = scalar_lea.sflag [#allocation3], %s424
        %s426 = sand.u32 %s153, 1
        %s427 = smul.addr %s426, 4
        %s428 = scalar_lea.vmem [#allocation2], %s427
        // Predicated region
        $region41: #{tpu_custom_call.1} parent=39 // pred_check
          %p429 = pneg %p163
        $region42: #{tpu_custom_call.1} parent=39 // pred_check_branch
          %431 = sbr.rel (%p429) target = $region44
        $region43: #{tpu_custom_call.1} parent=39 // pred_region
          %433 = vsyncadd %s425, 0
          %s434 = sadd.s32 %s24, %s23
          %s435 = smul.addr %s434, 4
          %s436 = scalar_lea.hbm %s5, %s435
          %s438 = sshll.u32 %s428, 4
          %s439 = int_to_ptr.vmem [resolvable:$true] %s438
          %s440 = sshll.u32 %s436, 4
          %s441 = int_to_ptr.hbm [resolvable:$true] %s440
          %443 = dma.vmem_to_hbm [thread:$0]  %s439, 64, %s441, %s425
        $region44: #{tpu_custom_call.1} parent=39 // pred_fallthru
          _
      $region40: #{tpu_custom_call.1} parent=5 // pred_fallthru
        _
      %p444 = scmp.le.s32.totalorder 2, %s14
      // Predicated region
      $region45: #{tpu_custom_call.1} parent=5 // pred_check
        %p445 = pneg %p444
      $region46: #{tpu_custom_call.1} parent=5 // pred_check_branch
        %447 = sbr.rel (%p445) target = $region48
      $region47: #{tpu_custom_call.1} parent=5 // pred_region
        %s448 = ssub.s32 %s14, 2
        // Predicated region
        $region49: #{tpu_custom_call.1} parent=47 // pred_check
          %p449 = pneg %p169
        $region50: #{tpu_custom_call.1} parent=47 // pred_check_branch
          %451 = sbr.rel (%p449) target = $region52
        $region51: #{tpu_custom_call.1} parent=47 // pred_region
          %s452 = sand.u32 %s154, 1
          %s453 = scalar_lea.sflag [#allocation3], %s452
          %s454 = sand.u32 %s154, 1
          %s455 = smul.addr %s454, 4
          %s456 = scalar_lea.vmem [#allocation2], %s455
          %458 = dma.done %s453, 64
        $region52: #{tpu_custom_call.1} parent=47 // pred_fallthru
          _
      $region48: #{tpu_custom_call.1} parent=5 // pred_fallthru
        _
    $region6: #{tpu_custom_call.1} parent=1 // loop_footer
      %s18 = sadd.s32 1, %s14
    $region7: #{tpu_custom_call.1} parent=1 // loop_footer_branch
      %13 = sbr.rel target = $region3
    $region8: #{tpu_custom_call.1} parent=1 // loop_exit
      _
    %459 = vsyncpa [#allocation3], 1
    %s460 = scalar_lea.sflag [#allocation3], 1
    %461 = vsyncpa %s460, 1

</llo_original>
